<compile_context>
chip_gen: v5e
topology: v5e:2x2
jax: 0.10.0
libtpu: 0.0.40
codegen_flags: <defaults>
</compile_context>

<pallas_src>
import functools

import jax
import jax.numpy as jnp
from jax import lax
from jax.experimental import pallas as pl
from jax.experimental.pallas import tpu as pltpu


def _sum_all(x):
    """Full reduction of a 2-D tile to shape (1, 1) (lane reduce then sublane)."""
    return jnp.sum(jnp.sum(x, axis=1, keepdims=True), axis=0, keepdims=True)


def _vicreg_kernel(coeff_ref, za_ref, zb_ref, out_ref,
                   gram_a, gram_b, acc_sim, acc_std, acc_vsq,
                   *, epsilon, batch, total_dim):
    d_idx = pl.program_id(0)

    @pl.when(d_idx == 0)
    def _init():
        gram_a[...] = jnp.zeros_like(gram_a)
        gram_b[...] = jnp.zeros_like(gram_b)
        acc_sim[...] = jnp.zeros_like(acc_sim)
        acc_std[...] = jnp.zeros_like(acc_std)
        acc_vsq[...] = jnp.zeros_like(acc_vsq)

    za = za_ref[...]
    zb = zb_ref[...]
    if za.dtype != jnp.float32:   # only cast if caller fed non-f32 embeddings
        za = za.astype(jnp.float32)
    if zb.dtype != jnp.float32:
        zb = zb.astype(jnp.float32)

    inv_b = jnp.float32(1.0 / batch)
    inv_bm1 = jnp.float32(1.0 / (batch - 1))

    # Center each feature over the batch (columns are complete inside a tile).
    za = za - jnp.sum(za, axis=0, keepdims=True) * inv_b
    zb = zb - jnp.sum(zb, axis=0, keepdims=True) * inv_b

    # Invariance (MSE) partial: sum of squared differences over this tile.
    diff = za - zb
    acc_sim[...] += _sum_all(diff * diff)

    # Variance partials (unbiased variance of centered columns).
    var_a = jnp.sum(za * za, axis=0, keepdims=True) * inv_bm1   # (1, tile_d)
    var_b = jnp.sum(zb * zb, axis=0, keepdims=True) * inv_bm1
    std_a = jnp.sqrt(var_a + epsilon)
    std_b = jnp.sqrt(var_b + epsilon)
    hinge = jnp.maximum(1.0 - std_a, 0.0) + jnp.maximum(1.0 - std_b, 0.0)
    acc_std[...] += _sum_all(hinge)
    acc_vsq[...] += _sum_all(var_a * var_a + var_b * var_b)

    # Gram accumulation: contraction over the last (lane/feature) axis,
    # i.e. G += Z_tile @ Z_tile^T, f32 accumulation at HIGHEST precision.
    dn = (((1,), (1,)), ((), ()))
    gram_a[...] += lax.dot_general(za, za, dn,
                                   precision=lax.Precision.HIGHEST,
                                   preferred_element_type=jnp.float32)
    gram_b[...] += lax.dot_general(zb, zb, dn,
                                   precision=lax.Precision.HIGHEST,
                                   preferred_element_type=jnp.float32)

    @pl.when(d_idx == pl.num_programs(0) - 1)
    def _finalize():
        inv_d = jnp.float32(1.0 / total_dim)
        sim = acc_sim[...] * (inv_b * inv_d)          # mean over B*D elements
        std = acc_std[...] * inv_d                    # mean over D (a + b terms)
        ga = gram_a[...]
        gb = gram_b[...]
        g2 = _sum_all(ga * ga) + _sum_all(gb * gb)    # ||Z Z^T||_F^2 for a and b
        # sum_offdiag(cov^2) = ||cov||_F^2 - sum(var^2); cov = Z^T Z / (B-1).
        cov = (g2 * (inv_bm1 * inv_bm1) - acc_vsq[...]) * inv_d

        # In-kernel weighted combine with runtime (SMEM) coefficients.
        total = coeff_ref[0] * sim + coeff_ref[1] * std + coeff_ref[2] * cov

        # Pack [total, sim, std, cov] into one lane-dense (1,128) store.
        lane = lax.broadcasted_iota(jnp.int32, (1, 128), 1)
        out_ref[...] = (jnp.where(lane == 0, total, 0.0)
                        + jnp.where(lane == 1, sim, 0.0)
                        + jnp.where(lane == 2, std, 0.0)
                        + jnp.where(lane == 3, cov, 0.0))


def _choose_tile_d(batch, dim, vmem_budget_bytes=48 * 1024 * 1024):
    """Largest D-tile (multiple of 128 dividing D) whose double-buffered input
    footprint plus the two BxB Gram accumulators fits the VMEM budget
    (conservative enough for v7x's 64 MiB physical VMEM)."""
    if dim % 128 != 0:
        return dim                       # small / irregular shape: single block
    gram_bytes = 2 * batch * batch * 4
    slack = 2 * 1024 * 1024
    avail = vmem_budget_bytes - gram_bytes - slack
    # double-buffered f32 inputs: 2 arrays * 2 buffers * batch * tile_d * 4 B
    max_tile = max(avail // (16 * batch), 128)
    best = 128
    t = 256
    while t <= min(dim, 2048):
        if dim % t == 0 and t <= max_tile:
            best = t
        t += 128
    return best


def _vicreg_pallas(z_a, z_b, coeffs, *, epsilon):
    """Runs the Pallas kernel; returns a (1,128) f32 array with
    [weighted_loss, sim_loss, std_loss, cov_loss] in lanes 0..3."""
    batch, dim = z_a.shape
    assert z_b.shape == (batch, dim)
    tile_d = _choose_tile_d(batch, dim)
    num_tiles = dim // tile_d

    kernel = functools.partial(_vicreg_kernel, epsilon=float(epsilon),
                               batch=batch, total_dim=dim)

    grid_spec = pltpu.PrefetchScalarGridSpec(
        num_scalar_prefetch=0,
        grid=(num_tiles,),
        in_specs=[
            pl.BlockSpec(memory_space=pltpu.MemorySpace.SMEM),      # coefficients
            pl.BlockSpec((batch, tile_d), lambda d: (0, d)),        # z_a tile
            pl.BlockSpec((batch, tile_d), lambda d: (0, d)),        # z_b tile
        ],
        out_specs=pl.BlockSpec((1, 128), lambda d: (0, 0)),
        scratch_shapes=[
            pltpu.VMEM((batch, batch), jnp.float32),   # Gram accumulator (view a)
            pltpu.VMEM((batch, batch), jnp.float32),   # Gram accumulator (view b)
            pltpu.VMEM((1, 1), jnp.float32),           # sum of squared diffs
            pltpu.VMEM((1, 1), jnp.float32),           # hinge-on-std sum
            pltpu.VMEM((1, 1), jnp.float32),           # sum of var^2
        ],
    )

    return pl.pallas_call(
        kernel,
        out_shape=jax.ShapeDtypeStruct((1, 128), jnp.float32),
        grid_spec=grid_spec,
        compiler_params=pltpu.CompilerParams(
            dimension_semantics=("arbitrary",),        # D axis is a reduction
            vmem_limit_bytes=64 * 1024 * 1024,
        ),
    )(coeffs, z_a, z_b)


def get_warmup_factor(current_epoch, current_step, total_steps,
                      warmup_epochs, num_epochs):
    # Mirrors VICRegLoss.get_warmup_factor (pure Python glue, not a hot path).
    min_factor = 0.3
    if current_epoch == 0:
        return 0.1
    elif current_epoch == 1:
        return 0.3
    max_factor = 0.5
    if total_steps > 0 and current_step > 0:
        steps_per_epoch = max(1, total_steps / max(num_epochs, 1))
        warmup_steps = warmup_epochs * steps_per_epoch
        progress = current_step / max(1, warmup_steps)
        raw_factor = min(max_factor, progress ** 0.33)
        return max(min_factor, raw_factor)
    progress = current_epoch / max(1, warmup_epochs)
    raw_factor = min(max_factor, progress ** 0.33)
    return max(min_factor, raw_factor)


def vicreg_loss(z_a, z_b,
                sim_coeff=10.0, var_coeff=5.0, cov_coeff=1.0,
                epsilon=0.001, warmup_epochs=5, curriculum=True,
                num_epochs=30, current_epoch=0, current_step=0,
                total_steps=0):
    """Full VICRegLoss.forward equivalent (defaults match module __init__)."""
    # TODO(synk): the module's throttled printing / .item() side effects stay
    #             host-side; they have no kernel equivalent.
    if curriculum:
        warmup_factor = get_warmup_factor(current_epoch, current_step,
                                          total_steps, warmup_epochs, num_epochs)
        effective_var_coeff = var_coeff * warmup_factor
        effective_cov_coeff = cov_coeff * warmup_factor
        if current_epoch == 0:
            effective_var_coeff *= 0.1
            effective_cov_coeff *= 0.1
    else:
        warmup_factor = 1.0
        effective_var_coeff = var_coeff
        effective_cov_coeff = cov_coeff

    coeffs = jnp.array([sim_coeff, effective_var_coeff, effective_cov_coeff, 0.0],
                       dtype=jnp.float32)
    packed = _vicreg_pallas(z_a, z_b, coeffs, epsilon=epsilon)
    row = packed[0]
    return {
        "loss": row[0],
        "invariance_loss": row[1],
        "variance_loss": row[2],
        "covariance_loss": row[3],
        "sim_weight": sim_coeff,
        "var_weight": effective_var_coeff,
        "cov_weight": effective_cov_coeff,
        "warmup_factor": warmup_factor if curriculum else 1.0,
    }


def _reference_components(z_a, z_b, epsilon=0.001):
    # Pure-JAX reference of the PyTorch math, for verification.
    B = z_a.shape[0]
    D = z_a.shape[1]
    z_a = z_a - jnp.mean(z_a, axis=0, keepdims=True)
    z_b = z_b - jnp.mean(z_b, axis=0, keepdims=True)
    sim = jnp.mean((z_a - z_b) ** 2)
    var_a = jnp.var(z_a, axis=0, ddof=1)
    var_b = jnp.var(z_b, axis=0, ddof=1)
    std = (jnp.mean(jax.nn.relu(1.0 - jnp.sqrt(var_a + epsilon)))
           + jnp.mean(jax.nn.relu(1.0 - jnp.sqrt(var_b + epsilon))))
    cov_a = z_a.T @ z_a / (B - 1)
    cov_b = z_b.T @ z_b / (B - 1)
    mask = 1.0 - jnp.eye(D, dtype=jnp.float32)
    cov = (jnp.sum((cov_a * mask) ** 2) / D
           + jnp.sum((cov_b * mask) ** 2) / D)
    return sim, std, cov


if __name__ == "__main__":
    key = jax.random.PRNGKey(0)
    ka, kb = jax.random.split(key)
    batch, dim = 8, 32
    z_a = jax.random.normal(ka, (batch, dim), dtype=jnp.float32)
    z_b = z_a + 0.1 * jax.random.normal(kb, (batch, dim), dtype=jnp.float32)

    out = vicreg_loss(z_a, z_b)
    jax.block_until_ready(out["loss"])

    # Verify against the pure-JAX reference (epoch 0 defaults: warmup 0.1 * 0.1).
    ref_sim, ref_std, ref_cov = _reference_components(z_a, z_b)
    assert jnp.allclose(out["invariance_loss"], ref_sim, rtol=1e-5, atol=1e-5)
    assert jnp.allclose(out["variance_loss"], ref_std, rtol=1e-5, atol=1e-5)
    assert jnp.allclose(out["covariance_loss"], ref_cov, rtol=1e-4, atol=1e-5)
    ref_loss = 10.0 * ref_sim + 0.05 * ref_std + 0.01 * ref_cov
    assert jnp.allclose(out["loss"], ref_loss, rtol=1e-4, atol=1e-5)

    print("KERNEL_OK")
</pallas_src>

<mosaic_0001>
module attributes {stable_mosaic.version = 11 : i64} {
  func.func @_vicreg_kernel(%arg0: i32, %arg1: memref<4xf32, #tpu.memory_space<smem>>, %arg2: memref<8x32xf32, #tpu.memory_space<vmem>>, %arg3: memref<8x32xf32, #tpu.memory_space<vmem>>, %arg4: memref<1x128xf32, #tpu.memory_space<vmem>>, %arg5: memref<8x8xf32, #tpu.memory_space<vmem>>, %arg6: memref<8x8xf32, #tpu.memory_space<vmem>>, %arg7: memref<1x1xf32, #tpu.memory_space<vmem>>, %arg8: memref<1x1xf32, #tpu.memory_space<vmem>>, %arg9: memref<1x1xf32, #tpu.memory_space<vmem>>) attributes {dimension_semantics = [#tpu.dimension_semantics<arbitrary>], iteration_bounds = array<i64: 1>, scalar_prefetch = 0 : i64, scratch_operands = 5 : i64, tpu.core_type = #tpu.core_type<tc>, window_params = [{transform_indices = @transform_0, window_bounds = array<i64: 4>}, {transform_indices = @transform_1, window_bounds = array<i64: 8, 32>}, {transform_indices = @transform_2, window_bounds = array<i64: 8, 32>}, {pipeline_mode = #tpu.pipeline_mode<synchronous>, transform_indices = @transform_3, window_bounds = array<i64: 1, 128>}]} {
    %c0_i32 = arith.constant 0 : i32
    %0 = arith.cmpi eq, %arg0, %c0_i32 : i32
    %1 = arith.extui %0 : i1 to i32
    %c0_i32_0 = arith.constant 0 : i32
    %2 = arith.cmpi ne, %1, %c0_i32_0 : i32
    scf.if %2 {
      %cst_49 = arith.constant 0.000000e+00 : f32
      %79 = vector.broadcast %cst_49 : f32 to vector<8x8xf32>
      %c0_50 = arith.constant 0 : index
      %c0_51 = arith.constant 0 : index
      %80 = vector.load %arg5[%c0_50, %c0_51] : memref<8x8xf32, #tpu.memory_space<vmem>>, vector<8x8xf32>
      tpu.vector_store %arg5[%c0_50, %c0_51], %79 {strides = array<i32>} : memref<8x8xf32, #tpu.memory_space<vmem>>, vector<8x8xf32>,
      %cst_52 = arith.constant 0.000000e+00 : f32
      %81 = vector.broadcast %cst_52 : f32 to vector<8x8xf32>
      %c0_53 = arith.constant 0 : index
      %c0_54 = arith.constant 0 : index
      %82 = vector.load %arg6[%c0_53, %c0_54] : memref<8x8xf32, #tpu.memory_space<vmem>>, vector<8x8xf32>
      tpu.vector_store %arg6[%c0_53, %c0_54], %81 {strides = array<i32>} : memref<8x8xf32, #tpu.memory_space<vmem>>, vector<8x8xf32>,
      %cst_55 = arith.constant 0.000000e+00 : f32
      %83 = vector.broadcast %cst_55 : f32 to vector<1x1xf32>
      %c0_56 = arith.constant 0 : index
      %c0_57 = arith.constant 0 : index
      %84 = vector.load %arg7[%c0_56, %c0_57] : memref<1x1xf32, #tpu.memory_space<vmem>>, vector<1x1xf32>
      tpu.vector_store %arg7[%c0_56, %c0_57], %83 {strides = array<i32>} : memref<1x1xf32, #tpu.memory_space<vmem>>, vector<1x1xf32>,
      %cst_58 = arith.constant 0.000000e+00 : f32
      %85 = vector.broadcast %cst_58 : f32 to vector<1x1xf32>
      %c0_59 = arith.constant 0 : index
      %c0_60 = arith.constant 0 : index
      %86 = vector.load %arg8[%c0_59, %c0_60] : memref<1x1xf32, #tpu.memory_space<vmem>>, vector<1x1xf32>
      tpu.vector_store %arg8[%c0_59, %c0_60], %85 {strides = array<i32>} : memref<1x1xf32, #tpu.memory_space<vmem>>, vector<1x1xf32>,
      %cst_61 = arith.constant 0.000000e+00 : f32
      %87 = vector.broadcast %cst_61 : f32 to vector<1x1xf32>
      %c0_62 = arith.constant 0 : index
      %c0_63 = arith.constant 0 : index
      %88 = vector.load %arg9[%c0_62, %c0_63] : memref<1x1xf32, #tpu.memory_space<vmem>>, vector<1x1xf32>
      tpu.vector_store %arg9[%c0_62, %c0_63], %87 {strides = array<i32>} : memref<1x1xf32, #tpu.memory_space<vmem>>, vector<1x1xf32>,
    } else {
    }
    %c0 = arith.constant 0 : index
    %c0_1 = arith.constant 0 : index
    %3 = vector.load %arg2[%c0, %c0_1] : memref<8x32xf32, #tpu.memory_space<vmem>>, vector<8x32xf32>
    %c0_2 = arith.constant 0 : index
    %c0_3 = arith.constant 0 : index
    %4 = vector.load %arg3[%c0_2, %c0_3] : memref<8x32xf32, #tpu.memory_space<vmem>>, vector<8x32xf32>
    %cst = arith.constant dense<0.000000e+00> : vector<32xf32>
    %5 = vector.multi_reduction <add>, %3, %cst [0] : vector<8x32xf32> to vector<32xf32>
    %6 = vector.shape_cast %5 : vector<32xf32> to vector<1x32xf32>
    %cst_4 = arith.constant 1.250000e-01 : f32
    %7 = vector.broadcast %cst_4 : f32 to vector<1x32xf32>
    %8 = arith.mulf %6, %7 : vector<1x32xf32>
    %9 = vector.broadcast %8 : vector<1x32xf32> to vector<8x32xf32>
    %10 = arith.subf %3, %9 : vector<8x32xf32>
    %cst_5 = arith.constant dense<0.000000e+00> : vector<32xf32>
    %11 = vector.multi_reduction <add>, %4, %cst_5 [0] : vector<8x32xf32> to vector<32xf32>
    %12 = vector.shape_cast %11 : vector<32xf32> to vector<1x32xf32>
    %cst_6 = arith.constant 1.250000e-01 : f32
    %13 = vector.broadcast %cst_6 : f32 to vector<1x32xf32>
    %14 = arith.mulf %12, %13 : vector<1x32xf32>
    %15 = vector.broadcast %14 : vector<1x32xf32> to vector<8x32xf32>
    %16 = arith.subf %4, %15 : vector<8x32xf32>
    %17 = arith.subf %10, %16 : vector<8x32xf32>
    %c0_7 = arith.constant 0 : index
    %c0_8 = arith.constant 0 : index
    %18 = vector.load %arg7[%c0_7, %c0_8] : memref<1x1xf32, #tpu.memory_space<vmem>>, vector<1x1xf32>
    %19 = arith.mulf %17, %17 : vector<8x32xf32>
    %cst_9 = arith.constant dense<0.000000e+00> : vector<8xf32>
    %20 = vector.multi_reduction <add>, %19, %cst_9 [1] : vector<8x32xf32> to vector<8xf32>
    %21 = vector.shape_cast %20 : vector<8xf32> to vector<8x1xf32>
    %cst_10 = arith.constant dense<0.000000e+00> : vector<1xf32>
    %22 = vector.multi_reduction <add>, %21, %cst_10 [0] : vector<8x1xf32> to vector<1xf32>
    %23 = vector.shape_cast %22 : vector<1xf32> to vector<1x1xf32>
    %24 = arith.addf %18, %23 : vector<1x1xf32>
    %c0_11 = arith.constant 0 : index
    %c0_12 = arith.constant 0 : index
    %25 = vector.load %arg7[%c0_11, %c0_12] : memref<1x1xf32, #tpu.memory_space<vmem>>, vector<1x1xf32>
    tpu.vector_store %arg7[%c0_11, %c0_12], %24 {strides = array<i32>} : memref<1x1xf32, #tpu.memory_space<vmem>>, vector<1x1xf32>,
    %26 = arith.mulf %10, %10 : vector<8x32xf32>
    %cst_13 = arith.constant dense<0.000000e+00> : vector<32xf32>
    %27 = vector.multi_reduction <add>, %26, %cst_13 [0] : vector<8x32xf32> to vector<32xf32>
    %28 = vector.shape_cast %27 : vector<32xf32> to vector<1x32xf32>
    %cst_14 = arith.constant 0.142857149 : f32
    %29 = vector.broadcast %cst_14 : f32 to vector<1x32xf32>
    %30 = arith.mulf %28, %29 : vector<1x32xf32>
    %31 = arith.mulf %16, %16 : vector<8x32xf32>
    %cst_15 = arith.constant dense<0.000000e+00> : vector<32xf32>
    %32 = vector.multi_reduction <add>, %31, %cst_15 [0] : vector<8x32xf32> to vector<32xf32>
    %33 = vector.shape_cast %32 : vector<32xf32> to vector<1x32xf32>
    %cst_16 = arith.constant 0.142857149 : f32
    %34 = vector.broadcast %cst_16 : f32 to vector<1x32xf32>
    %35 = arith.mulf %33, %34 : vector<1x32xf32>
    %cst_17 = arith.constant 1.000000e-03 : f32
    %36 = vector.broadcast %cst_17 : f32 to vector<1x32xf32>
    %37 = arith.addf %30, %36 : vector<1x32xf32>
    %38 = math.sqrt %37 : vector<1x32xf32>
    %cst_18 = arith.constant 1.000000e-03 : f32
    %39 = vector.broadcast %cst_18 : f32 to vector<1x32xf32>
    %40 = arith.addf %35, %39 : vector<1x32xf32>
    %41 = math.sqrt %40 : vector<1x32xf32>
    %cst_19 = arith.constant 1.000000e+00 : f32
    %42 = vector.broadcast %cst_19 : f32 to vector<1x32xf32>
    %43 = arith.subf %42, %38 : vector<1x32xf32>
    %cst_20 = arith.constant 0.000000e+00 : f32
    %44 = vector.broadcast %cst_20 : f32 to vector<1x32xf32>
    %45 = arith.maximumf %43, %44 : vector<1x32xf32>
    %cst_21 = arith.constant 1.000000e+00 : f32
    %46 = vector.broadcast %cst_21 : f32 to vector<1x32xf32>
    %47 = arith.subf %46, %41 : vector<1x32xf32>
    %cst_22 = arith.constant 0.000000e+00 : f32
    %48 = vector.broadcast %cst_22 : f32 to vector<1x32xf32>
    %49 = arith.maximumf %47, %48 : vector<1x32xf32>
    %50 = arith.addf %45, %49 : vector<1x32xf32>
    %c0_23 = arith.constant 0 : index
    %c0_24 = arith.constant 0 : index
    %51 = vector.load %arg8[%c0_23, %c0_24] : memref<1x1xf32, #tpu.memory_space<vmem>>, vector<1x1xf32>
    %cst_25 = arith.constant dense<0.000000e+00> : vector<1xf32>
    %52 = vector.multi_reduction <add>, %50, %cst_25 [1] : vector<1x32xf32> to vector<1xf32>
    %53 = vector.shape_cast %52 : vector<1xf32> to vector<1x1xf32>
    %cst_26 = arith.constant dense<0.000000e+00> : vector<1xf32>
    %54 = vector.multi_reduction <add>, %53, %cst_26 [0] : vector<1x1xf32> to vector<1xf32>
    %55 = vector.shape_cast %54 : vector<1xf32> to vector<1x1xf32>
    %56 = arith.addf %51, %55 : vector<1x1xf32>
    %c0_27 = arith.constant 0 : index
    %c0_28 = arith.constant 0 : index
    %57 = vector.load %arg8[%c0_27, %c0_28] : memref<1x1xf32, #tpu.memory_space<vmem>>, vector<1x1xf32>
    tpu.vector_store %arg8[%c0_27, %c0_28], %56 {strides = array<i32>} : memref<1x1xf32, #tpu.memory_space<vmem>>, vector<1x1xf32>,
    %c0_29 = arith.constant 0 : index
    %c0_30 = arith.constant 0 : index
    %58 = vector.load %arg9[%c0_29, %c0_30] : memref<1x1xf32, #tpu.memory_space<vmem>>, vector<1x1xf32>
    %59 = arith.mulf %30, %30 : vector<1x32xf32>
    %60 = arith.mulf %35, %35 : vector<1x32xf32>
    %61 = arith.addf %59, %60 : vector<1x32xf32>
    %cst_31 = arith.constant dense<0.000000e+00> : vector<1xf32>
    %62 = vector.multi_reduction <add>, %61, %cst_31 [1] : vector<1x32xf32> to vector<1xf32>
    %63 = vector.shape_cast %62 : vector<1xf32> to vector<1x1xf32>
    %cst_32 = arith.constant dense<0.000000e+00> : vector<1xf32>
    %64 = vector.multi_reduction <add>, %63, %cst_32 [0] : vector<1x1xf32> to vector<1xf32>
    %65 = vector.shape_cast %64 : vector<1xf32> to vector<1x1xf32>
    %66 = arith.addf %58, %65 : vector<1x1xf32>
    %c0_33 = arith.constant 0 : index
    %c0_34 = arith.constant 0 : index
    %67 = vector.load %arg9[%c0_33, %c0_34] : memref<1x1xf32, #tpu.memory_space<vmem>>, vector<1x1xf32>
    tpu.vector_store %arg9[%c0_33, %c0_34], %66 {strides = array<i32>} : memref<1x1xf32, #tpu.memory_space<vmem>>, vector<1x1xf32>,
    %c0_35 = arith.constant 0 : index
    %c0_36 = arith.constant 0 : index
    %68 = vector.load %arg5[%c0_35, %c0_36] : memref<8x8xf32, #tpu.memory_space<vmem>>, vector<8x8xf32>
    %cst_37 = arith.constant dense<0.000000e+00> : vector<8x8xf32>
    %69 = tpu.matmul %10, %10, %cst_37 {dimension_numbers = #tpu.dot_dimension_numbers<[1], [1], [0], [0], [0, 0, 1, 0], [], []>, precision = #tpu.contract_precision<fp32>} : vector<8x32xf32>, vector<8x32xf32>, vector<8x8xf32> -> vector<8x8xf32>
    %70 = arith.addf %68, %69 : vector<8x8xf32>
    %c0_38 = arith.constant 0 : index
    %c0_39 = arith.constant 0 : index
    %71 = vector.load %arg5[%c0_38, %c0_39] : memref<8x8xf32, #tpu.memory_space<vmem>>, vector<8x8xf32>
    tpu.vector_store %arg5[%c0_38, %c0_39], %70 {strides = array<i32>} : memref<8x8xf32, #tpu.memory_space<vmem>>, vector<8x8xf32>,
    %c0_40 = arith.constant 0 : index
    %c0_41 = arith.constant 0 : index
    %72 = vector.load %arg6[%c0_40, %c0_41] : memref<8x8xf32, #tpu.memory_space<vmem>>, vector<8x8xf32>
    %cst_42 = arith.constant dense<0.000000e+00> : vector<8x8xf32>
    %73 = tpu.matmul %16, %16, %cst_42 {dimension_numbers = #tpu.dot_dimension_numbers<[1], [1], [0], [0], [0, 0, 1, 0], [], []>, precision = #tpu.contract_precision<fp32>} : vector<8x32xf32>, vector<8x32xf32>, vector<8x8xf32> -> vector<8x8xf32>
    %74 = arith.addf %72, %73 : vector<8x8xf32>
    %c0_43 = arith.constant 0 : index
    %c0_44 = arith.constant 0 : index
    %75 = vector.load %arg6[%c0_43, %c0_44] : memref<8x8xf32, #tpu.memory_space<vmem>>, vector<8x8xf32>
    tpu.vector_store %arg6[%c0_43, %c0_44], %74 {strides = array<i32>} : memref<8x8xf32, #tpu.memory_space<vmem>>, vector<8x8xf32>,
    %c0_i32_45 = arith.constant 0 : i32
    %76 = arith.cmpi eq, %arg0, %c0_i32_45 : i32
    %77 = arith.extui %76 : i1 to i32
    %cst_46 = arith.constant 1.250000e-01 : f32
    %cst_47 = arith.constant 0.142857149 : f32
    %c0_i32_48 = arith.constant 0 : i32
    %78 = arith.cmpi ne, %77, %c0_i32_48 : i32
    scf.if %78 {
      %c0_49 = arith.constant 0 : index
      %c0_50 = arith.constant 0 : index
      %79 = vector.load %arg7[%c0_49, %c0_50] : memref<1x1xf32, #tpu.memory_space<vmem>>, vector<1x1xf32>
      %cst_51 = arith.constant 3.125000e-02 : f32
      %80 = arith.mulf %cst_46, %cst_51 : f32
      %81 = vector.broadcast %80 : f32 to vector<1x1xf32>
      %82 = arith.mulf %79, %81 : vector<1x1xf32>
      %c0_52 = arith.constant 0 : index
      %c0_53 = arith.constant 0 : index
      %83 = vector.load %arg8[%c0_52, %c0_53] : memref<1x1xf32, #tpu.memory_space<vmem>>, vector<1x1xf32>
      %cst_54 = arith.constant 3.125000e-02 : f32
      %84 = vector.broadcast %cst_54 : f32 to vector<1x1xf32>
      %85 = arith.mulf %83, %84 : vector<1x1xf32>
      %c0_55 = arith.constant 0 : index
      %c0_56 = arith.constant 0 : index
      %86 = vector.load %arg5[%c0_55, %c0_56] : memref<8x8xf32, #tpu.memory_space<vmem>>, vector<8x8xf32>
      %c0_57 = arith.constant 0 : index
      %c0_58 = arith.constant 0 : index
      %87 = vector.load %arg6[%c0_57, %c0_58] : memref<8x8xf32, #tpu.memory_space<vmem>>, vector<8x8xf32>
      %88 = arith.mulf %86, %86 : vector<8x8xf32>
      %cst_59 = arith.constant dense<0.000000e+00> : vector<8xf32>
      %89 = vector.multi_reduction <add>, %88, %cst_59 [1] : vector<8x8xf32> to vector<8xf32>
      %90 = vector.shape_cast %89 : vector<8xf32> to vector<8x1xf32>
      %cst_60 = arith.constant dense<0.000000e+00> : vector<1xf32>
      %91 = vector.multi_reduction <add>, %90, %cst_60 [0] : vector<8x1xf32> to vector<1xf32>
      %92 = vector.shape_cast %91 : vector<1xf32> to vector<1x1xf32>
      %93 = arith.mulf %87, %87 : vector<8x8xf32>
      %cst_61 = arith.constant dense<0.000000e+00> : vector<8xf32>
      %94 = vector.multi_reduction <add>, %93, %cst_61 [1] : vector<8x8xf32> to vector<8xf32>
      %95 = vector.shape_cast %94 : vector<8xf32> to vector<8x1xf32>
      %cst_62 = arith.constant dense<0.000000e+00> : vector<1xf32>
      %96 = vector.multi_reduction <add>, %95, %cst_62 [0] : vector<8x1xf32> to vector<1xf32>
      %97 = vector.shape_cast %96 : vector<1xf32> to vector<1x1xf32>
      %98 = arith.addf %92, %97 : vector<1x1xf32>
      %99 = arith.mulf %cst_47, %cst_47 : f32
      %100 = vector.broadcast %99 : f32 to vector<1x1xf32>
      %101 = arith.mulf %98, %100 : vector<1x1xf32>
      %c0_63 = arith.constant 0 : index
      %c0_64 = arith.constant 0 : index
      %102 = vector.load %arg9[%c0_63, %c0_64] : memref<1x1xf32, #tpu.memory_space<vmem>>, vector<1x1xf32>
      %103 = arith.subf %101, %102 : vector<1x1xf32>
      %cst_65 = arith.constant 3.125000e-02 : f32
      %104 = vector.broadcast %cst_65 : f32 to vector<1x1xf32>
      %105 = arith.mulf %103, %104 : vector<1x1xf32>
      %c0_66 = arith.constant 0 : index
      %106 = memref.load %arg1[%c0_66] : memref<4xf32, #tpu.memory_space<smem>>
      %107 = vector.broadcast %106 : f32 to vector<1x1xf32>
      %108 = arith.mulf %107, %82 : vector<1x1xf32>
      %c1 = arith.constant 1 : index
      %109 = memref.load %arg1[%c1] : memref<4xf32, #tpu.memory_space<smem>>
      %110 = vector.broadcast %109 : f32 to vector<1x1xf32>
      %111 = arith.mulf %110, %85 : vector<1x1xf32>
      %112 = arith.addf %108, %111 : vector<1x1xf32>
      %c2 = arith.constant 2 : index
      %113 = memref.load %arg1[%c2] : memref<4xf32, #tpu.memory_space<smem>>
      %114 = vector.broadcast %113 : f32 to vector<1x1xf32>
      %115 = arith.mulf %114, %105 : vector<1x1xf32>
      %116 = arith.addf %112, %115 : vector<1x1xf32>
      %117 = tpu.iota {dimensions = array<i32: 1>} : vector<1x128xi32>
      %c0_i32_67 = arith.constant 0 : i32
      %118 = vector.broadcast %c0_i32_67 : i32 to vector<1x128xi32>
      %119 = arith.cmpi eq, %117, %118 : vector<1x128xi32>
      %cst_68 = arith.constant 0.000000e+00 : f32
      %120 = vector.shape_cast %116 : vector<1x1xf32> to vector<1x1xf32>
      %121 = vector.broadcast %120 : vector<1x1xf32> to vector<1x128xf32>
      %122 = vector.broadcast %cst_68 : f32 to vector<1x128xf32>
      %123 = arith.select %119, %121, %122 : vector<1x128xi1>, vector<1x128xf32>
      %c1_i32 = arith.constant 1 : i32
      %124 = vector.broadcast %c1_i32 : i32 to vector<1x128xi32>
      %125 = arith.cmpi eq, %117, %124 : vector<1x128xi32>
      %cst_69 = arith.constant 0.000000e+00 : f32
      %126 = vector.shape_cast %82 : vector<1x1xf32> to vector<1x1xf32>
      %127 = vector.broadcast %126 : vector<1x1xf32> to vector<1x128xf32>
      %128 = vector.broadcast %cst_69 : f32 to vector<1x128xf32>
      %129 = arith.select %125, %127, %128 : vector<1x128xi1>, vector<1x128xf32>
      %130 = arith.addf %123, %129 : vector<1x128xf32>
      %c2_i32 = arith.constant 2 : i32
      %131 = vector.broadcast %c2_i32 : i32 to vector<1x128xi32>
      %132 = arith.cmpi eq, %117, %131 : vector<1x128xi32>
      %cst_70 = arith.constant 0.000000e+00 : f32
      %133 = vector.shape_cast %85 : vector<1x1xf32> to vector<1x1xf32>
      %134 = vector.broadcast %133 : vector<1x1xf32> to vector<1x128xf32>
      %135 = vector.broadcast %cst_70 : f32 to vector<1x128xf32>
      %136 = arith.select %132, %134, %135 : vector<1x128xi1>, vector<1x128xf32>
      %137 = arith.addf %130, %136 : vector<1x128xf32>
      %c3_i32 = arith.constant 3 : i32
      %138 = vector.broadcast %c3_i32 : i32 to vector<1x128xi32>
      %139 = arith.cmpi eq, %117, %138 : vector<1x128xi32>
      %cst_71 = arith.constant 0.000000e+00 : f32
      %140 = vector.shape_cast %105 : vector<1x1xf32> to vector<1x1xf32>
      %141 = vector.broadcast %140 : vector<1x1xf32> to vector<1x128xf32>
      %142 = vector.broadcast %cst_71 : f32 to vector<1x128xf32>
      %143 = arith.select %139, %141, %142 : vector<1x128xi1>, vector<1x128xf32>
      %144 = arith.addf %137, %143 : vector<1x128xf32>
      %c0_72 = arith.constant 0 : index
      %c0_73 = arith.constant 0 : index
      %145 = vector.load %arg4[%c0_72, %c0_73] : memref<1x128xf32, #tpu.memory_space<vmem>>, vector<1x128xf32>
      tpu.vector_store %arg4[%c0_72, %c0_73], %144 {strides = array<i32>} : memref<1x128xf32, #tpu.memory_space<vmem>>, vector<1x128xf32>,
    } else {
    }
    return
  }
  func.func @transform_0(%arg0: i32) -> i32 {
    %c0_i32 = arith.constant 0 : i32
    %c0_i32_0 = arith.constant 0 : i32
    return %c0_i32 : i32
  }
  func.func @transform_1(%arg0: i32) -> (i32, i32) {
    %c0_i32 = arith.constant 0 : i32
    %c0_i32_0 = arith.constant 0 : i32
    return %c0_i32, %arg0 : i32, i32
  }
  func.func @transform_2(%arg0: i32) -> (i32, i32) {
    %c0_i32 = arith.constant 0 : i32
    %c0_i32_0 = arith.constant 0 : i32
    return %c0_i32, %arg0 : i32, i32
  }
  func.func @transform_3(%arg0: i32) -> (i32, i32) {
    %c0_i32 = arith.constant 0 : i32
    %c0_i32_0 = arith.constant 0 : i32
    %c0_i32_1 = arith.constant 0 : i32
    return %c0_i32, %c0_i32_0 : i32, i32
  }
}

</mosaic_0001>

<llo_original>
// kernel: tpu_custom_call.1
$region0: #{tpu_custom_call.1}
  #allocation0 [shape = 'u32[]', space=smem, size = 0x4, offset = 0x4, fixed_abs, tag = 'smem constant byte address 0x4 - core index']
  #allocation1 [shape = 'u32[72,128]{1,0:T(1,128)}', space=vmem, size = 0x9000, scoped, tag = 'internal scratch']
  #allocation2 [shape = 'f32[8,8]{1,0:T(8,128)}', space=vmem, size = 0x1000, scoped, tag = 'scratch operand']
  #allocation3 [shape = 'f32[8,8]{1,0:T(8,128)}', space=vmem, size = 0x1000, scoped, tag = 'scratch operand']
  #allocation4 [shape = 'f32[1,1]{1,0:T(1,128)}', space=vmem, size = 0x200, scoped, tag = 'scratch operand']
  #allocation5 [shape = 'f32[1,1]{1,0:T(1,128)}', space=vmem, size = 0x200, scoped, tag = 'scratch operand']
  #allocation6 [shape = 'f32[1,1]{1,0:T(1,128)}', space=vmem, size = 0x200, scoped, tag = 'scratch operand']
  %s0 = inlined_call_operand.hbm [shape: f32[4], index: 0, kind: input, shape index: {}]
  %s1 = inlined_call_operand.hbm [shape: f32[8,32], index: 1, kind: input, shape index: {}]
  %s2 = inlined_call_operand.hbm [shape: f32[8,32], index: 2, kind: input, shape index: {}]
  %s3 = inlined_call_operand.hbm [shape: f32[1,128], index: 3, kind: output, shape index: {}]
  %s4 = sld [smem:[#allocation0]]
  $region42: #{tpu_custom_call.1} parent=0
    _
  %s6 = ssub.s32 1, %s4
  %s7 = scalar_select 0, %s6, %s4
  $region1: #{tpu_custom_call.1} parent=0
    #allocation7 [shape = 'u8[512]{0}', space=smem, size = 0x200, scoped, tag = 'input window, operand 0, single buffered']
    #allocation8 [shape = 's32[1]{0}', space=sflag, size = 0x4, scoped, tag = 'scoped memory for tpu_custom_call.1']
    #allocation9 [shape = 's32[1]{0}', space=sflag, size = 0x4, scoped, tag = 'scoped memory for tpu_custom_call.1']
    #allocation10 [shape = 's32[1]{0}', space=sflag, size = 0x4, scoped, tag = 'scoped memory for tpu_custom_call.1']
    #allocation11 [shape = 'u8[4096]{0}', space=vmem, size = 0x1000, scoped, tag = 'input window, operand 1, single buffered']
    #allocation12 [shape = 'u8[4096]{0}', space=vmem, size = 0x1000, scoped, tag = 'input window, operand 2, single buffered']
    #allocation13 [shape = 's32[1]{0}', space=sflag, size = 0x4, scoped, tag = 'scoped memory for tpu_custom_call.1']
    #allocation14 [shape = 'u8[512]{0}', space=vmem, size = 0x400, scoped, tag = 'output window, operand 0, single buffered']
    %8 = vsyncpa [#allocation10], 0
    %9 = vsyncpa [#allocation8], 0
    %10 = vsyncpa [#allocation13], 0
    %11 = vsyncpa [#allocation9], 0
    // Predicated region
    $region2: #{tpu_custom_call.1} parent=1 // pred_check
      _
    $region3: #{tpu_custom_call.1} parent=1 // pred_check_branch
      %13 = sbr.rel (0) target = $region5
    $region4: #{tpu_custom_call.1} parent=1 // pred_region
      %15 = vsyncadd [#allocation10], 0
      %s17 = sshll.u32 %s0, 4
      %s18 = int_to_ptr.hbm [resolvable:$true] %s17
      %20 = dma.hbm_to_smem %s18, 16, [#allocation7], [#allocation10]
    $region5: #{tpu_custom_call.1} parent=1 // pred_fallthru
      _
    // Predicated region
    $region6: #{tpu_custom_call.1} parent=1 // pred_check
      _
    $region7: #{tpu_custom_call.1} parent=1 // pred_check_branch
      %22 = sbr.rel (0) target = $region9
    $region8: #{tpu_custom_call.1} parent=1 // pred_region
      %24 = vsyncadd [#allocation8], 0
      %s26 = sshll.u32 %s1, 4
      %s27 = int_to_ptr.hbm [resolvable:$true] %s26
      %s28 = sshll.u32 [#allocation11], 4
      %s29 = int_to_ptr.vmem [resolvable:$true] %s28
      %31 = dma.hbm_to_vmem [thread:$0]  %s27, 128, %s29, [#allocation8]
    $region9: #{tpu_custom_call.1} parent=1 // pred_fallthru
      _
    // Predicated region
    $region10: #{tpu_custom_call.1} parent=1 // pred_check
      _
    $region11: #{tpu_custom_call.1} parent=1 // pred_check_branch
      %33 = sbr.rel (0) target = $region13
    $region12: #{tpu_custom_call.1} parent=1 // pred_region
      %35 = vsyncadd [#allocation13], 0
      %s37 = sshll.u32 %s2, 4
      %s38 = int_to_ptr.hbm [resolvable:$true] %s37
      %s39 = sshll.u32 [#allocation12], 4
      %s40 = int_to_ptr.vmem [resolvable:$true] %s39
      %42 = dma.hbm_to_vmem [thread:$0]  %s38, 128, %s40, [#allocation13]
    $region13: #{tpu_custom_call.1} parent=1 // pred_fallthru
      _
    // Predicated region
    $region14: #{tpu_custom_call.1} parent=1 // pred_check
      _
    $region15: #{tpu_custom_call.1} parent=1 // pred_check_branch
      %44 = sbr.rel (0) target = $region17
    $region16: #{tpu_custom_call.1} parent=1 // pred_region
      %46 = dma.done [#allocation10], 16
    $region17: #{tpu_custom_call.1} parent=1 // pred_fallthru
      _
    // Predicated region
    $region18: #{tpu_custom_call.1} parent=1 // pred_check
      _
    $region19: #{tpu_custom_call.1} parent=1 // pred_check_branch
      %48 = sbr.rel (0) target = $region21
    $region20: #{tpu_custom_call.1} parent=1 // pred_region
      %50 = dma.done [#allocation8], 128
    $region21: #{tpu_custom_call.1} parent=1 // pred_fallthru
      _
    // Predicated region
    $region22: #{tpu_custom_call.1} parent=1 // pred_check
      _
    $region23: #{tpu_custom_call.1} parent=1 // pred_check_branch
      %52 = sbr.rel (0) target = $region25
    $region24: #{tpu_custom_call.1} parent=1 // pred_region
      %54 = dma.done [#allocation13], 128
    $region25: #{tpu_custom_call.1} parent=1 // pred_fallthru
      _
    %55 = sfence
    %p56 = scmp.eq.s32.totalorder 0, 0
    // Predicated region
    $region26: #{tpu_custom_call.1} parent=1 // pred_check
      %p57 = pneg %p56
    $region27: #{tpu_custom_call.1} parent=1 // pred_check_branch
      %59 = sbr.rel (%p57) target = $region29
    $region28: #{tpu_custom_call.1} parent=1 // pred_region
      %vm60 = vcmask 64512
      %61 = vst.msk [vmem:[#allocation2] sm:$0xff] %vm60, 0.0
      %62 = vst.msk [vmem:[#allocation3] sm:$0xff] %vm60, 0.0
      %vm63 = vcmask 0
      %64 = vst.msk [vmem:[#allocation4] sm:$0x1] %vm63, 0.0
      %65 = vst.msk [vmem:[#allocation5] sm:$0x1] %vm63, 0.0
      %66 = vst.msk [vmem:[#allocation6] sm:$0x1] %vm63, 0.0
    $region29: #{tpu_custom_call.1} parent=1 // pred_fallthru
      _
    %v67 = vld [vmem:[#allocation11] sm:$0xff]
    %v68 = vld [vmem:[#allocation12] sm:$0xff]
    %vm69 = vcmask 261120
    %v70 = vsel %vm69, %v67, 0.0
    %v71 = vrot.slane %v70, 4
    %v72 = vadd.f32 %v70, %v71
    %v73 = vrot.slane %v72, 2
    %v74 = vadd.f32 %v72, %v73
    %v75 = vrot.slane %v74, 1
    %v76 = vadd.f32 %v74, %v75
    %v77 = vmul.f32 %v76, 0.125
    %v78 = vsub.f32 %v67, %v77
    %v79 = vsel %vm69, %v68, 0.0
    %v80 = vrot.slane %v79, 4
    %v81 = vadd.f32 %v79, %v80
    %v82 = vrot.slane %v81, 2
    %v83 = vadd.f32 %v81, %v82
    %v84 = vrot.slane %v83, 1
    %v85 = vadd.f32 %v83, %v84
    %v86 = vmul.f32 %v85, 0.125
    %v87 = vsub.f32 %v68, %v86
    %v88 = vsub.f32 %v78, %v87
    %v89 = vld [vmem:[#allocation4] sm:$0x1]
    %v90 = vmul.f32 %v88, %v88
    %v91 = vsel %vm69, %v90, 0.0
    %92 = vadd.xlane.f32.xlu0 %v91
    %v93 = vpop.xlane.xlu0 %92
    %v94 = vrot.slane %v93, 4
    %v95 = vadd.f32 %v93, %v94
    %v96 = vrot.slane %v95, 2
    %v97 = vadd.f32 %v95, %v96
    %v98 = vrot.slane %v97, 1
    %v99 = vadd.f32 %v97, %v98
    %v100 = vadd.f32 %v89, %v99
    %vm101 = vcmask 0
    %102 = vst.msk [vmem:[#allocation4] sm:$0x1] %vm101, %v100
    %v103 = vmul.f32 %v78, %v78
    %v104 = vsel %vm69, %v103, 0.0
    %v105 = vrot.slane %v104, 4
    %v106 = vadd.f32 %v104, %v105
    %v107 = vrot.slane %v106, 2
    %v108 = vadd.f32 %v106, %v107
    %v109 = vrot.slane %v108, 1
    %v110 = vadd.f32 %v108, %v109
    %v111 = vmul.f32 %v110, 0.14285715
    %v112 = vmul.f32 %v87, %v87
    %v113 = vsel %vm69, %v112, 0.0
    %v114 = vrot.slane %v113, 4
    %v115 = vadd.f32 %v113, %v114
    %v116 = vrot.slane %v115, 2
    %v117 = vadd.f32 %v115, %v116
    %v118 = vrot.slane %v117, 1
    %v119 = vadd.f32 %v117, %v118
    %v120 = vmul.f32 %v119, 0.14285715
    %v121 = vadd.f32 %v111, 0.001
    %v122 = vrsqrt.pop %v121
    %v123 = vmul.f32 %v122, %v121
    %v124 = vmul.f32 %v123, %v122
    %v125 = vmul.f32 0.5, %v124
    %v126 = vsub.f32 1.5, %v125
    %v127 = vmul.f32 %v122, %v126
    %v128 = vmul.f32 %v121, %v127
    %vm129 = vcmp.eq.f32.partialorder %v121, inf
    %v130 = vsel %vm129, %v121, %v128
    %vm131 = vcmp.eq.f32.partialorder %v121, 0.0
    %v132 = vand.u32 %v121, 2147483648
    %v133 = vsel %vm131, %v132, %v130
    %v134 = vadd.f32 %v120, 0.001
    %v135 = vrsqrt.pop %v134
    %v136 = vmul.f32 %v135, %v134
    %v137 = vmul.f32 %v136, %v135
    %v138 = vmul.f32 0.5, %v137
    %v139 = vsub.f32 1.5, %v138
    %v140 = vmul.f32 %v135, %v139
    %v141 = vmul.f32 %v134, %v140
    %vm142 = vcmp.eq.f32.partialorder %v134, inf
    %v143 = vsel %vm142, %v134, %v141
    %vm144 = vcmp.eq.f32.partialorder %v134, 0.0
    %v145 = vand.u32 %v134, 2147483648
    %v146 = vsel %vm144, %v145, %v143
    %v147 = vsub.f32 1.0, %v133
    %v148 = vmax.f32 %v147, 0.0
    %v149 = vsub.f32 1.0, %v146
    %v150 = vmax.f32 %v149, 0.0
    %v151 = vadd.f32 %v148, %v150
    %v152 = vld [vmem:[#allocation5] sm:$0x1]
    %v153 = vsel %vm69, %v151, 0.0
    %154 = vadd.xlane.f32.xlu0 %v153
    %v155 = vpop.xlane.xlu0 %154
    %v156 = vadd.f32 %v155, 0.0
    %v157 = vadd.f32 %v152, %v156
    %158 = vst.msk [vmem:[#allocation5] sm:$0x1] %vm101, %v157
    %v159 = vld [vmem:[#allocation6] sm:$0x1]
    %v160 = vmul.f32 %v111, %v111
    %v161 = vmul.f32 %v120, %v120
    %v162 = vadd.f32 %v160, %v161
    %v163 = vsel %vm69, %v162, 0.0
    %164 = vadd.xlane.f32.xlu0 %v163
    %v165 = vpop.xlane.xlu0 %164
    %v166 = vadd.f32 %v165, 0.0
    %v167 = vadd.f32 %v159, %v166
    %168 = vst.msk [vmem:[#allocation6] sm:$0x1] %vm101, %v167
    %v169 = vld [vmem:[#allocation2] sm:$0xff]
    %v171 = vsel %vm69, %v78, 0
    %173 = vmatpush.xpose.msra.mxu0 0.0
    %174 = vmatpush.xpose.msra.mxu0 0.0
    %175 = vmatpush.xpose.msra.mxu0 0.0
    %176 = vmatpush.xpose.msra.mxu0 0.0
    %177 = vmatpush.xpose.msra.mxu0 0.0
    %178 = vmatpush.xpose.msra.mxu0 0.0
    %179 = vmatpush.xpose.msra.mxu0 0.0
    %180 = vmatpush.xpose.msra.mxu0 0.0
    %181 = vmatpush.xpose.msra.mxu0 0.0
    %182 = vmatpush.xpose.msra.mxu0 0.0
    %183 = vmatpush.xpose.msra.mxu0 0.0
    %184 = vmatpush.xpose.msra.mxu0 0.0
    %185 = vmatpush.xpose.msra.mxu0 0.0
    %186 = vmatpush.xpose.msra.mxu0 0.0
    %187 = vmatpush.xpose.msra.mxu0 0.0
    %v188 = vand.u32 %v171, 4294901760
    %189 = vmatpush.xpose.msra.mxu0 %v188
    %v190 = vand.u32 %v171, 4294901760
    %v191 = vsub.f32 %v171, %v190
    %v192 = vand.u32 %v191, 4294901760
    %v193 = vsub.f32 %v191, %v192
    %v194 = vand.u32 %v193, 4294901760
    %195 = vmatmul.f32.gmra.mxu0 %v194
    %v196 = vpop.f32.mrf.mxu0
    %v197 = vadd.f32 0.0, %v196
    %198 = vdwg.mxu0
    %199 = vmatpush.xpose.msra.mxu0 0.0
    %200 = vmatpush.xpose.msra.mxu0 0.0
    %201 = vmatpush.xpose.msra.mxu0 0.0
    %202 = vmatpush.xpose.msra.mxu0 0.0
    %203 = vmatpush.xpose.msra.mxu0 0.0
    %204 = vmatpush.xpose.msra.mxu0 0.0
    %205 = vmatpush.xpose.msra.mxu0 0.0
    %206 = vmatpush.xpose.msra.mxu0 0.0
    %207 = vmatpush.xpose.msra.mxu0 0.0
    %208 = vmatpush.xpose.msra.mxu0 0.0
    %209 = vmatpush.xpose.msra.mxu0 0.0
    %210 = vmatpush.xpose.msra.mxu0 0.0
    %211 = vmatpush.xpose.msra.mxu0 0.0
    %212 = vmatpush.xpose.msra.mxu0 0.0
    %213 = vmatpush.xpose.msra.mxu0 0.0
    %v214 = vand.u32 %v171, 4294901760
    %v215 = vsub.f32 %v171, %v214
    %v216 = vand.u32 %v215, 4294901760
    %v217 = vsub.f32 %v215, %v216
    %v218 = vand.u32 %v217, 4294901760
    %219 = vmatpush.xpose.msra.mxu0 %v218
    %v220 = vand.u32 %v171, 4294901760
    %221 = vmatmul.f32.gmra.mxu0 %v220
    %v222 = vpop.f32.mrf.mxu0
    %v223 = vadd.f32 %v197, %v222
    %224 = vdwg.mxu0
    %225 = vmatpush.xpose.msra.mxu0 0.0
    %226 = vmatpush.xpose.msra.mxu0 0.0
    %227 = vmatpush.xpose.msra.mxu0 0.0
    %228 = vmatpush.xpose.msra.mxu0 0.0
    %229 = vmatpush.xpose.msra.mxu0 0.0
    %230 = vmatpush.xpose.msra.mxu0 0.0
    %231 = vmatpush.xpose.msra.mxu0 0.0
    %232 = vmatpush.xpose.msra.mxu0 0.0
    %233 = vmatpush.xpose.msra.mxu0 0.0
    %234 = vmatpush.xpose.msra.mxu0 0.0
    %235 = vmatpush.xpose.msra.mxu0 0.0
    %236 = vmatpush.xpose.msra.mxu0 0.0
    %237 = vmatpush.xpose.msra.mxu0 0.0
    %238 = vmatpush.xpose.msra.mxu0 0.0
    %239 = vmatpush.xpose.msra.mxu0 0.0
    %v240 = vand.u32 %v171, 4294901760
    %v241 = vsub.f32 %v171, %v240
    %242 = vmatpush.xpose.msra.mxu0 %v241
    %v243 = vand.u32 %v171, 4294901760
    %v244 = vsub.f32 %v171, %v243
    %245 = vmatmul.f32.gmra.mxu0 %v244
    %v246 = vpop.f32.mrf.mxu0
    %v247 = vadd.f32 %v223, %v246
    %248 = vdwg.mxu0
    %249 = vmatpush.xpose.msra.mxu0 0.0
    %250 = vmatpush.xpose.msra.mxu0 0.0
    %251 = vmatpush.xpose.msra.mxu0 0.0
    %252 = vmatpush.xpose.msra.mxu0 0.0
    %253 = vmatpush.xpose.msra.mxu0 0.0
    %254 = vmatpush.xpose.msra.mxu0 0.0
    %255 = vmatpush.xpose.msra.mxu0 0.0
    %256 = vmatpush.xpose.msra.mxu0 0.0
    %257 = vmatpush.xpose.msra.mxu0 0.0
    %258 = vmatpush.xpose.msra.mxu0 0.0
    %259 = vmatpush.xpose.msra.mxu0 0.0
    %260 = vmatpush.xpose.msra.mxu0 0.0
    %261 = vmatpush.xpose.msra.mxu0 0.0
    %262 = vmatpush.xpose.msra.mxu0 0.0
    %263 = vmatpush.xpose.msra.mxu0 0.0
    %v264 = vand.u32 %v171, 4294901760
    %265 = vmatpush.xpose.msra.mxu0 %v264
    %v266 = vand.u32 %v171, 4294901760
    %v267 = vsub.f32 %v171, %v266
    %v268 = vand.u32 %v267, 4294901760
    %269 = vmatmul.f32.gmra.mxu0 %v268
    %v270 = vpop.f32.mrf.mxu0
    %v271 = vadd.f32 %v247, %v270
    %272 = vdwg.mxu0
    %273 = vmatpush.xpose.msra.mxu0 0.0
    %274 = vmatpush.xpose.msra.mxu0 0.0
    %275 = vmatpush.xpose.msra.mxu0 0.0
    %276 = vmatpush.xpose.msra.mxu0 0.0
    %277 = vmatpush.xpose.msra.mxu0 0.0
    %278 = vmatpush.xpose.msra.mxu0 0.0
    %279 = vmatpush.xpose.msra.mxu0 0.0
    %280 = vmatpush.xpose.msra.mxu0 0.0
    %281 = vmatpush.xpose.msra.mxu0 0.0
    %282 = vmatpush.xpose.msra.mxu0 0.0
    %283 = vmatpush.xpose.msra.mxu0 0.0
    %284 = vmatpush.xpose.msra.mxu0 0.0
    %285 = vmatpush.xpose.msra.mxu0 0.0
    %286 = vmatpush.xpose.msra.mxu0 0.0
    %287 = vmatpush.xpose.msra.mxu0 0.0
    %v288 = vand.u32 %v171, 4294901760
    %v289 = vsub.f32 %v171, %v288
    %v290 = vand.u32 %v289, 4294901760
    %291 = vmatpush.xpose.msra.mxu0 %v290
    %v292 = vand.u32 %v171, 4294901760
    %293 = vmatmul.f32.gmra.mxu0 %v292
    %v294 = vpop.f32.mrf.mxu0
    %v295 = vadd.f32 %v271, %v294
    %296 = vdwg.mxu0
    %297 = vmatpush.xpose.msra.mxu0 0.0
    %298 = vmatpush.xpose.msra.mxu0 0.0
    %299 = vmatpush.xpose.msra.mxu0 0.0
    %300 = vmatpush.xpose.msra.mxu0 0.0
    %301 = vmatpush.xpose.msra.mxu0 0.0
    %302 = vmatpush.xpose.msra.mxu0 0.0
    %303 = vmatpush.xpose.msra.mxu0 0.0
    %304 = vmatpush.xpose.msra.mxu0 0.0
    %305 = vmatpush.xpose.msra.mxu0 0.0
    %306 = vmatpush.xpose.msra.mxu0 0.0
    %307 = vmatpush.xpose.msra.mxu0 0.0
    %308 = vmatpush.xpose.msra.mxu0 0.0
    %309 = vmatpush.xpose.msra.mxu0 0.0
    %310 = vmatpush.xpose.msra.mxu0 0.0
    %311 = vmatpush.xpose.msra.mxu0 0.0
    %v312 = vand.u32 %v171, 4294901760
    %313 = vmatpush.xpose.msra.mxu0 %v312
    %v314 = vand.u32 %v171, 4294901760
    %315 = vmatmul.f32.gmra.mxu0 %v314
    %v316 = vpop.f32.mrf.mxu0
    %v317 = vadd.f32 %v295, %v316
    %318 = vdwg.mxu0
    %v319 = vadd.f32 %v169, %v317
    %vm320 = vcmask 64512
    %321 = vst.msk [vmem:[#allocation2] sm:$0xff] %vm320, %v319
    %v322 = vld [vmem:[#allocation3] sm:$0xff]
    %v324 = vsel %vm69, %v87, 0
    %326 = vmatpush.xpose.msra.mxu0 0.0
    %327 = vmatpush.xpose.msra.mxu0 0.0
    %328 = vmatpush.xpose.msra.mxu0 0.0
    %329 = vmatpush.xpose.msra.mxu0 0.0
    %330 = vmatpush.xpose.msra.mxu0 0.0
    %331 = vmatpush.xpose.msra.mxu0 0.0
    %332 = vmatpush.xpose.msra.mxu0 0.0
    %333 = vmatpush.xpose.msra.mxu0 0.0
    %334 = vmatpush.xpose.msra.mxu0 0.0
    %335 = vmatpush.xpose.msra.mxu0 0.0
    %336 = vmatpush.xpose.msra.mxu0 0.0
    %337 = vmatpush.xpose.msra.mxu0 0.0
    %338 = vmatpush.xpose.msra.mxu0 0.0
    %339 = vmatpush.xpose.msra.mxu0 0.0
    %340 = vmatpush.xpose.msra.mxu0 0.0
    %v341 = vand.u32 %v324, 4294901760
    %342 = vmatpush.xpose.msra.mxu0 %v341
    %v343 = vand.u32 %v324, 4294901760
    %v344 = vsub.f32 %v324, %v343
    %v345 = vand.u32 %v344, 4294901760
    %v346 = vsub.f32 %v344, %v345
    %v347 = vand.u32 %v346, 4294901760
    %348 = vmatmul.f32.gmra.mxu0 %v347
    %v349 = vpop.f32.mrf.mxu0
    %v350 = vadd.f32 0.0, %v349
    %351 = vdwg.mxu0
    %352 = vmatpush.xpose.msra.mxu0 0.0
    %353 = vmatpush.xpose.msra.mxu0 0.0
    %354 = vmatpush.xpose.msra.mxu0 0.0
    %355 = vmatpush.xpose.msra.mxu0 0.0
    %356 = vmatpush.xpose.msra.mxu0 0.0
    %357 = vmatpush.xpose.msra.mxu0 0.0
    %358 = vmatpush.xpose.msra.mxu0 0.0
    %359 = vmatpush.xpose.msra.mxu0 0.0
    %360 = vmatpush.xpose.msra.mxu0 0.0
    %361 = vmatpush.xpose.msra.mxu0 0.0
    %362 = vmatpush.xpose.msra.mxu0 0.0
    %363 = vmatpush.xpose.msra.mxu0 0.0
    %364 = vmatpush.xpose.msra.mxu0 0.0
    %365 = vmatpush.xpose.msra.mxu0 0.0
    %366 = vmatpush.xpose.msra.mxu0 0.0
    %v367 = vand.u32 %v324, 4294901760
    %v368 = vsub.f32 %v324, %v367
    %v369 = vand.u32 %v368, 4294901760
    %v370 = vsub.f32 %v368, %v369
    %v371 = vand.u32 %v370, 4294901760
    %372 = vmatpush.xpose.msra.mxu0 %v371
    %v373 = vand.u32 %v324, 4294901760
    %374 = vmatmul.f32.gmra.mxu0 %v373
    %v375 = vpop.f32.mrf.mxu0
    %v376 = vadd.f32 %v350, %v375
    %377 = vdwg.mxu0
    %378 = vmatpush.xpose.msra.mxu0 0.0
    %379 = vmatpush.xpose.msra.mxu0 0.0
    %380 = vmatpush.xpose.msra.mxu0 0.0
    %381 = vmatpush.xpose.msra.mxu0 0.0
    %382 = vmatpush.xpose.msra.mxu0 0.0
    %383 = vmatpush.xpose.msra.mxu0 0.0
    %384 = vmatpush.xpose.msra.mxu0 0.0
    %385 = vmatpush.xpose.msra.mxu0 0.0
    %386 = vmatpush.xpose.msra.mxu0 0.0
    %387 = vmatpush.xpose.msra.mxu0 0.0
    %388 = vmatpush.xpose.msra.mxu0 0.0
    %389 = vmatpush.xpose.msra.mxu0 0.0
    %390 = vmatpush.xpose.msra.mxu0 0.0
    %391 = vmatpush.xpose.msra.mxu0 0.0
    %392 = vmatpush.xpose.msra.mxu0 0.0
    %v393 = vand.u32 %v324, 4294901760
    %v394 = vsub.f32 %v324, %v393
    %395 = vmatpush.xpose.msra.mxu0 %v394
    %v396 = vand.u32 %v324, 4294901760
    %v397 = vsub.f32 %v324, %v396
    %398 = vmatmul.f32.gmra.mxu0 %v397
    %v399 = vpop.f32.mrf.mxu0
    %v400 = vadd.f32 %v376, %v399
    %401 = vdwg.mxu0
    %402 = vmatpush.xpose.msra.mxu0 0.0
    %403 = vmatpush.xpose.msra.mxu0 0.0
    %404 = vmatpush.xpose.msra.mxu0 0.0
    %405 = vmatpush.xpose.msra.mxu0 0.0
    %406 = vmatpush.xpose.msra.mxu0 0.0
    %407 = vmatpush.xpose.msra.mxu0 0.0
    %408 = vmatpush.xpose.msra.mxu0 0.0
    %409 = vmatpush.xpose.msra.mxu0 0.0
    %410 = vmatpush.xpose.msra.mxu0 0.0
    %411 = vmatpush.xpose.msra.mxu0 0.0
    %412 = vmatpush.xpose.msra.mxu0 0.0
    %413 = vmatpush.xpose.msra.mxu0 0.0
    %414 = vmatpush.xpose.msra.mxu0 0.0
    %415 = vmatpush.xpose.msra.mxu0 0.0
    %416 = vmatpush.xpose.msra.mxu0 0.0
    %v417 = vand.u32 %v324, 4294901760
    %418 = vmatpush.xpose.msra.mxu0 %v417
    %v419 = vand.u32 %v324, 4294901760
    %v420 = vsub.f32 %v324, %v419
    %v421 = vand.u32 %v420, 4294901760
    %422 = vmatmul.f32.gmra.mxu0 %v421
    %v423 = vpop.f32.mrf.mxu0
    %v424 = vadd.f32 %v400, %v423
    %425 = vdwg.mxu0
    %426 = vmatpush.xpose.msra.mxu0 0.0
    %427 = vmatpush.xpose.msra.mxu0 0.0
    %428 = vmatpush.xpose.msra.mxu0 0.0
    %429 = vmatpush.xpose.msra.mxu0 0.0
    %430 = vmatpush.xpose.msra.mxu0 0.0
    %431 = vmatpush.xpose.msra.mxu0 0.0
    %432 = vmatpush.xpose.msra.mxu0 0.0
    %433 = vmatpush.xpose.msra.mxu0 0.0
    %434 = vmatpush.xpose.msra.mxu0 0.0
    %435 = vmatpush.xpose.msra.mxu0 0.0
    %436 = vmatpush.xpose.msra.mxu0 0.0
    %437 = vmatpush.xpose.msra.mxu0 0.0
    %438 = vmatpush.xpose.msra.mxu0 0.0
    %439 = vmatpush.xpose.msra.mxu0 0.0
    %440 = vmatpush.xpose.msra.mxu0 0.0
    %v441 = vand.u32 %v324, 4294901760
    %v442 = vsub.f32 %v324, %v441
    %v443 = vand.u32 %v442, 4294901760
    %444 = vmatpush.xpose.msra.mxu0 %v443
    %v445 = vand.u32 %v324, 4294901760
    %446 = vmatmul.f32.gmra.mxu0 %v445
    %v447 = vpop.f32.mrf.mxu0
    %v448 = vadd.f32 %v424, %v447
    %449 = vdwg.mxu0
    %450 = vmatpush.xpose.msra.mxu0 0.0
    %451 = vmatpush.xpose.msra.mxu0 0.0
    %452 = vmatpush.xpose.msra.mxu0 0.0
    %453 = vmatpush.xpose.msra.mxu0 0.0
    %454 = vmatpush.xpose.msra.mxu0 0.0
    %455 = vmatpush.xpose.msra.mxu0 0.0
    %456 = vmatpush.xpose.msra.mxu0 0.0
    %457 = vmatpush.xpose.msra.mxu0 0.0
    %458 = vmatpush.xpose.msra.mxu0 0.0
    %459 = vmatpush.xpose.msra.mxu0 0.0
    %460 = vmatpush.xpose.msra.mxu0 0.0
    %461 = vmatpush.xpose.msra.mxu0 0.0
    %462 = vmatpush.xpose.msra.mxu0 0.0
    %463 = vmatpush.xpose.msra.mxu0 0.0
    %464 = vmatpush.xpose.msra.mxu0 0.0
    %v465 = vand.u32 %v324, 4294901760
    %466 = vmatpush.xpose.msra.mxu0 %v465
    %v467 = vand.u32 %v324, 4294901760
    %468 = vmatmul.f32.gmra.mxu0 %v467
    %v469 = vpop.f32.mrf.mxu0
    %v470 = vadd.f32 %v448, %v469
    %471 = vdwg.mxu0
    %v472 = vadd.f32 %v322, %v470
    %473 = vst.msk [vmem:[#allocation3] sm:$0xff] %vm320, %v472
    // Predicated region
    $region30: #{tpu_custom_call.1} parent=1 // pred_check
      %p474 = pneg %p56
    $region31: #{tpu_custom_call.1} parent=1 // pred_check_branch
      %476 = sbr.rel (%p474) target = $region33
    $region32: #{tpu_custom_call.1} parent=1 // pred_region
      %v477 = vld [vmem:[#allocation4] sm:$0x1]
      %v478 = vmul.f32 %v477, 0.00390625
      %v479 = vld [vmem:[#allocation5] sm:$0x1]
      %v480 = vmul.f32 %v479, 0.03125
      %v481 = vld [vmem:[#allocation2] sm:$0xff]
      %v482 = vld [vmem:[#allocation3] sm:$0xff]
      %v483 = vmul.f32 %v481, %v481
      %v484 = vsel %vm320, %v483, 0.0
      %485 = vadd.xlane.f32.xlu0 %v484
      %v486 = vpop.xlane.xlu0 %485
      %v487 = vrot.slane %v486, 4
      %v488 = vadd.f32 %v486, %v487
      %v489 = vrot.slane %v488, 2
      %v490 = vadd.f32 %v488, %v489
      %v491 = vrot.slane %v490, 1
      %v492 = vadd.f32 %v490, %v491
      %v493 = vmul.f32 %v482, %v482
      %v494 = vsel %vm320, %v493, 0.0
      %495 = vadd.xlane.f32.xlu0 %v494
      %v496 = vpop.xlane.xlu0 %495
      %v497 = vrot.slane %v496, 4
      %v498 = vadd.f32 %v496, %v497
      %v499 = vrot.slane %v498, 2
      %v500 = vadd.f32 %v498, %v499
      %v501 = vrot.slane %v500, 1
      %v502 = vadd.f32 %v500, %v501
      %v503 = vadd.f32 %v492, %v502
      %v504 = vmul.f32 %v503, 0.020408165
      %v505 = vld [vmem:[#allocation6] sm:$0x1]
      %v506 = vsub.f32 %v504, %v505
      %v507 = vmul.f32 %v506, 0.03125
      %s508 = sld [smem:[#allocation7]]
      %v509 = vstv %s508
      %v510 = vmul.f32 %v509, %v478
      %s511 = sld [smem:[#allocation7 + $0x1]]
      %v512 = vstv %s511
      %v513 = vmul.f32 %v512, %v480
      %v514 = vadd.f32 %v510, %v513
      %s515 = sld [smem:[#allocation7 + $0x2]]
      %v516 = vstv %s515
      %v517 = vmul.f32 %v516, %v507
      %v518 = vadd.f32 %v514, %v517
      %v519 = vlaneseq
      %v520 = vand.u32 %v519, 127
      %vm521 = vcmp.eq.s32.totalorder %v520, 0
      %523 = vset.pattern.permute.xlu0 0
      %524 = vperm.xlu0 %523, %v518
      %v525 = vpop.permute.xlu0 %524
      %v527 = vperm.slane %v525, 0
      %v528 = vsel %vm521, %v527, 0.0
      %vm529 = vcmp.eq.s32.totalorder %v520, 1
      %531 = vset.pattern.permute.xlu0 0
      %532 = vperm.xlu0 %531, %v478
      %v533 = vpop.permute.xlu0 %532
      %v535 = vperm.slane %v533, 0
      %v536 = vsel %vm529, %v535, 0.0
      %v537 = vadd.f32 %v528, %v536
      %vm538 = vcmp.eq.s32.totalorder %v520, 2
      %540 = vset.pattern.permute.xlu0 0
      %541 = vperm.xlu0 %540, %v480
      %v542 = vpop.permute.xlu0 %541
      %v544 = vperm.slane %v542, 0
      %v545 = vsel %vm538, %v544, 0.0
      %v546 = vadd.f32 %v537, %v545
      %vm547 = vcmp.eq.s32.totalorder %v520, 3
      %549 = vset.pattern.permute.xlu0 0
      %550 = vperm.xlu0 %549, %v507
      %v551 = vpop.permute.xlu0 %550
      %v553 = vperm.slane %v551, 0
      %v554 = vsel %vm547, %v553, 0.0
      %v555 = vadd.f32 %v546, %v554
      %556 = vst [vmem:[#allocation14] sm:$0x1] %v555
    $region33: #{tpu_custom_call.1} parent=1 // pred_fallthru
      _
    // Predicated region
    $region34: #{tpu_custom_call.1} parent=1 // pred_check
      _
    $region35: #{tpu_custom_call.1} parent=1 // pred_check_branch
      %558 = sbr.rel (0) target = $region37
    $region36: #{tpu_custom_call.1} parent=1 // pred_region
      %560 = vsyncadd [#allocation9], 0
      %s562 = sshll.u32 [#allocation14], 4
      %s563 = int_to_ptr.vmem [resolvable:$true] %s562
      %s564 = sshll.u32 %s3, 4
      %s565 = int_to_ptr.hbm [resolvable:$true] %s564
      %567 = dma.vmem_to_hbm [thread:$0]  %s563, 16, %s565, [#allocation9]
    $region37: #{tpu_custom_call.1} parent=1 // pred_fallthru
      _
    // Predicated region
    $region38: #{tpu_custom_call.1} parent=1 // pred_check
      _
    $region39: #{tpu_custom_call.1} parent=1 // pred_check_branch
      %569 = sbr.rel (0) target = $region41
    $region40: #{tpu_custom_call.1} parent=1 // pred_region
      %571 = dma.done [#allocation9], 16
    $region41: #{tpu_custom_call.1} parent=1 // pred_fallthru
      _
    %572 = vsyncpa [#allocation8], 1
    %573 = vsyncpa [#allocation13], 1
    %574 = vsyncpa [#allocation9], 1
    %575 = vsyncpa [#allocation10], 1

</llo_original>
